<compile_context>
chip_gen: v5e
topology: v5e:2x2
jax: 0.10.0
libtpu: 0.0.40
codegen_flags: <defaults>
</compile_context>

<pallas_src>
import functools

import jax
import jax.numpy as jnp
from jax.experimental import pallas as pl
from jax.experimental.pallas import tpu as pltpu


def _round_up(n, m):
    return ((n + m - 1) // m) * m


def _soft_dice_kernel(x_ref, y_ref, dc_ref, tp_acc, sx_acc, sy_acc, *, smooth):
    # Grid = (row_blocks, spatial_blocks); spatial axis (1) is the reduction.
    s = pl.program_id(1)

    @pl.when(s == 0)
    def _init():
        tp_acc[...] = jnp.zeros_like(tp_acc)
        sx_acc[...] = jnp.zeros_like(sx_acc)
        sy_acc[...] = jnp.zeros_like(sy_acc)

    # Keep wire dtype on the DMA; accumulate in f32.
    x = x_ref[...].astype(jnp.float32)
    y = y_ref[...].astype(jnp.float32)

    tp_acc[...] += jnp.sum(x * y, axis=-1, keepdims=True)   # sum(x*y)
    sx_acc[...] += jnp.sum(x, axis=-1, keepdims=True)       # sum(x)
    sy_acc[...] += jnp.sum(y, axis=-1, keepdims=True)       # sum(y)

    @pl.when(s == pl.num_programs(1) - 1)
    def _finalize():
        tp = tp_acc[...]
        nominator = 2.0 * tp + smooth
        # 2*tp + fp + fn == sum(x) + sum(y)
        denominator = sx_acc[...] + sy_acc[...] + smooth + 1e-8
        dc_ref[...] = nominator / denominator


def soft_dice_loss(x, y_onehot, smooth=1.0, *, block_rows=None, block_spatial=None):
    """SoftDiceLoss.forward (batch_dice=False, do_bg=True, apply_nonlin=None).

    x, y_onehot: (B, C, H, W) with matching shapes. Returns scalar f32 loss.
    """
    B, C, H, W = x.shape
    assert y_onehot.shape == x.shape
    rows, S = B * C, H * W

    x2 = x.reshape(rows, S)
    y2 = y_onehot.reshape(rows, S).astype(x2.dtype)

    # ---- tile-size selection (multiples of (8, 128)) ----
    if block_rows is None:
        block_rows = min(_round_up(rows, 8), 256)
    block_rows = _round_up(block_rows, 8)
    if block_spatial is None:
        block_spatial = min(_round_up(S, 128), 1024)
    block_spatial = _round_up(block_spatial, 128)

    rows_pad = _round_up(rows, block_rows)
    S_pad = _round_up(S, block_spatial)
    if (rows_pad, S_pad) != (rows, S):
        # Zero padding contributes nothing to tp / sum(x) / sum(y).
        x2 = jnp.pad(x2, ((0, rows_pad - rows), (0, S_pad - S)))
        y2 = jnp.pad(y2, ((0, rows_pad - rows), (0, S_pad - S)))

    grid = (rows_pad // block_rows, S_pad // block_spatial)

    itemsize = jnp.dtype(x2.dtype).itemsize
    block_bytes = block_rows * block_spatial * itemsize
    # 2 inputs x 2 pipeline buffers (+ tiny accumulators/output) + headroom.
    vmem_limit = int(min(max(2 * 2 * block_bytes * 2, 8 << 20), 32 << 20))

    kernel = functools.partial(_soft_dice_kernel, smooth=float(smooth))

    dc = pl.pallas_call(
        kernel,
        out_shape=jax.ShapeDtypeStruct((rows_pad, 1), jnp.float32),
        grid=grid,
        in_specs=[
            pl.BlockSpec((block_rows, block_spatial), lambda r, s: (r, s)),
            pl.BlockSpec((block_rows, block_spatial), lambda r, s: (r, s)),
        ],
        out_specs=pl.BlockSpec((block_rows, 1), lambda r, s: (r, 0)),
        scratch_shapes=[
            pltpu.VMEM((block_rows, 1), jnp.float32),  # tp accumulator
            pltpu.VMEM((block_rows, 1), jnp.float32),  # sum(x) accumulator
            pltpu.VMEM((block_rows, 1), jnp.float32),  # sum(y) accumulator
        ],
        compiler_params=pltpu.CompilerParams(
            dimension_semantics=("parallel", "arbitrary"),
            vmem_limit_bytes=vmem_limit,
        ),
    )(x2, y2)

    # batch_dice=False, do_bg=True -> mean over all real (b, c) entries, negated.
    return -jnp.mean(dc[:rows, 0])


def _reference(x, y_onehot, smooth=1.0):
    # Pure-JAX mirror of the PyTorch forward (batch_dice=False, do_bg=True).
    x = x.astype(jnp.float32)
    y_onehot = y_onehot.astype(jnp.float32)
    axes = (2, 3)
    tp = jnp.sum(x * y_onehot, axis=axes)
    fp = jnp.sum(x * (1.0 - y_onehot), axis=axes)
    fn = jnp.sum((1.0 - x) * y_onehot, axis=axes)
    nominator = 2.0 * tp + smooth
    denominator = 2.0 * tp + fp + fn + smooth
    dc = nominator / (denominator + 1e-8)
    return -jnp.mean(dc)


if __name__ == "__main__":
    key = jax.random.PRNGKey(0)
    kx, ky = jax.random.split(key)

    B, C, H, W = 2, 4, 16, 16

    # Network output (apply_nonlin=None -> used as-is).
    x = jax.random.uniform(kx, (B, C, H, W), dtype=jnp.float32)

    # Label map -> one-hot target (the torch.no_grad scatter_ path; data prep
    # done in plain-JAX glue).
    labels = jax.random.randint(ky, (B, H, W), 0, C)
    y_onehot = jax.nn.one_hot(labels, C, dtype=jnp.float32)      # (B, H, W, C)
    y_onehot = jnp.transpose(y_onehot, (0, 3, 1, 2))             # (B, C, H, W)

    # block_spatial=128 so the small demo exercises the multi-tile
    # accumulate/init/finalize path (2 spatial tiles of 128 lanes).
    loss = soft_dice_loss(x, y_onehot, smooth=1.0, block_spatial=128)
    loss = jax.block_until_ready(loss)

    ref = _reference(x, y_onehot, smooth=1.0)
    assert jnp.allclose(loss, ref, atol=1e-5, rtol=1e-5), (loss, ref)

    print("KERNEL_OK")
</pallas_src>

<mosaic_0001>
module attributes {stable_mosaic.version = 11 : i64} {
  func.func @_soft_dice_kernel(%arg0: i32, %arg1: i32, %arg2: memref<8x128xf32, #tpu.memory_space<vmem>>, %arg3: memref<8x128xf32, #tpu.memory_space<vmem>>, %arg4: memref<8x1xf32, #tpu.memory_space<vmem>>, %arg5: memref<8x1xf32, #tpu.memory_space<vmem>>, %arg6: memref<8x1xf32, #tpu.memory_space<vmem>>, %arg7: memref<8x1xf32, #tpu.memory_space<vmem>>) attributes {dimension_semantics = [#tpu.dimension_semantics<parallel>, #tpu.dimension_semantics<arbitrary>], iteration_bounds = array<i64: 1, 2>, scalar_prefetch = 0 : i64, scratch_operands = 3 : i64, tpu.core_type = #tpu.core_type<tc>, window_params = [{transform_indices = @transform_0, window_bounds = array<i64: 8, 128>}, {transform_indices = @transform_1, window_bounds = array<i64: 8, 128>}, {transform_indices = @transform_2, window_bounds = array<i64: 8, 1>}]} {
    %c0_i32 = arith.constant 0 : i32
    %0 = arith.cmpi eq, %arg1, %c0_i32 : i32
    %1 = arith.extui %0 : i1 to i32
    %c0_i32_0 = arith.constant 0 : i32
    %2 = arith.cmpi ne, %1, %c0_i32_0 : i32
    scf.if %2 {
      %cst_19 = arith.constant 0.000000e+00 : f32
      %24 = vector.broadcast %cst_19 : f32 to vector<8x1xf32>
      %c0_20 = arith.constant 0 : index
      %c0_21 = arith.constant 0 : index
      %25 = vector.load %arg5[%c0_20, %c0_21] : memref<8x1xf32, #tpu.memory_space<vmem>>, vector<8x1xf32>
      tpu.vector_store %arg5[%c0_20, %c0_21], %24 {strides = array<i32>} : memref<8x1xf32, #tpu.memory_space<vmem>>, vector<8x1xf32>,
      %cst_22 = arith.constant 0.000000e+00 : f32
      %26 = vector.broadcast %cst_22 : f32 to vector<8x1xf32>
      %c0_23 = arith.constant 0 : index
      %c0_24 = arith.constant 0 : index
      %27 = vector.load %arg6[%c0_23, %c0_24] : memref<8x1xf32, #tpu.memory_space<vmem>>, vector<8x1xf32>
      tpu.vector_store %arg6[%c0_23, %c0_24], %26 {strides = array<i32>} : memref<8x1xf32, #tpu.memory_space<vmem>>, vector<8x1xf32>,
      %cst_25 = arith.constant 0.000000e+00 : f32
      %28 = vector.broadcast %cst_25 : f32 to vector<8x1xf32>
      %c0_26 = arith.constant 0 : index
      %c0_27 = arith.constant 0 : index
      %29 = vector.load %arg7[%c0_26, %c0_27] : memref<8x1xf32, #tpu.memory_space<vmem>>, vector<8x1xf32>
      tpu.vector_store %arg7[%c0_26, %c0_27], %28 {strides = array<i32>} : memref<8x1xf32, #tpu.memory_space<vmem>>, vector<8x1xf32>,
    } else {
    }
    %c0 = arith.constant 0 : index
    %c0_1 = arith.constant 0 : index
    %3 = vector.load %arg2[%c0, %c0_1] : memref<8x128xf32, #tpu.memory_space<vmem>>, vector<8x128xf32>
    %c0_2 = arith.constant 0 : index
    %c0_3 = arith.constant 0 : index
    %4 = vector.load %arg3[%c0_2, %c0_3] : memref<8x128xf32, #tpu.memory_space<vmem>>, vector<8x128xf32>
    %c0_4 = arith.constant 0 : index
    %c0_5 = arith.constant 0 : index
    %5 = vector.load %arg5[%c0_4, %c0_5] : memref<8x1xf32, #tpu.memory_space<vmem>>, vector<8x1xf32>
    %6 = arith.mulf %3, %4 : vector<8x128xf32>
    %cst = arith.constant dense<0.000000e+00> : vector<8xf32>
    %7 = vector.multi_reduction <add>, %6, %cst [1] : vector<8x128xf32> to vector<8xf32>
    %8 = vector.shape_cast %7 : vector<8xf32> to vector<8x1xf32>
    %9 = arith.addf %5, %8 : vector<8x1xf32>
    %c0_6 = arith.constant 0 : index
    %c0_7 = arith.constant 0 : index
    %10 = vector.load %arg5[%c0_6, %c0_7] : memref<8x1xf32, #tpu.memory_space<vmem>>, vector<8x1xf32>
    tpu.vector_store %arg5[%c0_6, %c0_7], %9 {strides = array<i32>} : memref<8x1xf32, #tpu.memory_space<vmem>>, vector<8x1xf32>,
    %c0_8 = arith.constant 0 : index
    %c0_9 = arith.constant 0 : index
    %11 = vector.load %arg6[%c0_8, %c0_9] : memref<8x1xf32, #tpu.memory_space<vmem>>, vector<8x1xf32>
    %cst_10 = arith.constant dense<0.000000e+00> : vector<8xf32>
    %12 = vector.multi_reduction <add>, %3, %cst_10 [1] : vector<8x128xf32> to vector<8xf32>
    %13 = vector.shape_cast %12 : vector<8xf32> to vector<8x1xf32>
    %14 = arith.addf %11, %13 : vector<8x1xf32>
    %c0_11 = arith.constant 0 : index
    %c0_12 = arith.constant 0 : index
    %15 = vector.load %arg6[%c0_11, %c0_12] : memref<8x1xf32, #tpu.memory_space<vmem>>, vector<8x1xf32>
    tpu.vector_store %arg6[%c0_11, %c0_12], %14 {strides = array<i32>} : memref<8x1xf32, #tpu.memory_space<vmem>>, vector<8x1xf32>,
    %c0_13 = arith.constant 0 : index
    %c0_14 = arith.constant 0 : index
    %16 = vector.load %arg7[%c0_13, %c0_14] : memref<8x1xf32, #tpu.memory_space<vmem>>, vector<8x1xf32>
    %cst_15 = arith.constant dense<0.000000e+00> : vector<8xf32>
    %17 = vector.multi_reduction <add>, %4, %cst_15 [1] : vector<8x128xf32> to vector<8xf32>
    %18 = vector.shape_cast %17 : vector<8xf32> to vector<8x1xf32>
    %19 = arith.addf %16, %18 : vector<8x1xf32>
    %c0_16 = arith.constant 0 : index
    %c0_17 = arith.constant 0 : index
    %20 = vector.load %arg7[%c0_16, %c0_17] : memref<8x1xf32, #tpu.memory_space<vmem>>, vector<8x1xf32>
    tpu.vector_store %arg7[%c0_16, %c0_17], %19 {strides = array<i32>} : memref<8x1xf32, #tpu.memory_space<vmem>>, vector<8x1xf32>,
    %c1_i32 = arith.constant 1 : i32
    %21 = arith.cmpi eq, %arg1, %c1_i32 : i32
    %22 = arith.extui %21 : i1 to i32
    %c0_i32_18 = arith.constant 0 : i32
    %23 = arith.cmpi ne, %22, %c0_i32_18 : i32
    scf.if %23 {
      %c0_19 = arith.constant 0 : index
      %c0_20 = arith.constant 0 : index
      %24 = vector.load %arg5[%c0_19, %c0_20] : memref<8x1xf32, #tpu.memory_space<vmem>>, vector<8x1xf32>
      %cst_21 = arith.constant 2.000000e+00 : f32
      %25 = vector.broadcast %cst_21 : f32 to vector<8x1xf32>
      %26 = arith.mulf %25, %24 : vector<8x1xf32>
      %cst_22 = arith.constant 1.000000e+00 : f32
      %27 = vector.broadcast %cst_22 : f32 to vector<8x1xf32>
      %28 = arith.addf %26, %27 : vector<8x1xf32>
      %c0_23 = arith.constant 0 : index
      %c0_24 = arith.constant 0 : index
      %29 = vector.load %arg6[%c0_23, %c0_24] : memref<8x1xf32, #tpu.memory_space<vmem>>, vector<8x1xf32>
      %c0_25 = arith.constant 0 : index
      %c0_26 = arith.constant 0 : index
      %30 = vector.load %arg7[%c0_25, %c0_26] : memref<8x1xf32, #tpu.memory_space<vmem>>, vector<8x1xf32>
      %31 = arith.addf %29, %30 : vector<8x1xf32>
      %cst_27 = arith.constant 1.000000e+00 : f32
      %32 = vector.broadcast %cst_27 : f32 to vector<8x1xf32>
      %33 = arith.addf %31, %32 : vector<8x1xf32>
      %cst_28 = arith.constant 9.99999993E-9 : f32
      %34 = vector.broadcast %cst_28 : f32 to vector<8x1xf32>
      %35 = arith.addf %33, %34 : vector<8x1xf32>
      %36 = arith.divf %28, %35 : vector<8x1xf32>
      %c0_29 = arith.constant 0 : index
      %c0_30 = arith.constant 0 : index
      %37 = vector.load %arg4[%c0_29, %c0_30] : memref<8x1xf32, #tpu.memory_space<vmem>>, vector<8x1xf32>
      tpu.vector_store %arg4[%c0_29, %c0_30], %36 {strides = array<i32>} : memref<8x1xf32, #tpu.memory_space<vmem>>, vector<8x1xf32>,
    } else {
    }
    return
  }
  func.func @transform_0(%arg0: i32, %arg1: i32) -> (i32, i32) {
    %c0_i32 = arith.constant 0 : i32
    return %arg0, %arg1 : i32, i32
  }
  func.func @transform_1(%arg0: i32, %arg1: i32) -> (i32, i32) {
    %c0_i32 = arith.constant 0 : i32
    return %arg0, %arg1 : i32, i32
  }
  func.func @transform_2(%arg0: i32, %arg1: i32) -> (i32, i32) {
    %c0_i32 = arith.constant 0 : i32
    %c0_i32_0 = arith.constant 0 : i32
    return %arg0, %c0_i32 : i32, i32
  }
}

</mosaic_0001>

<llo_original>
// kernel: tpu_custom_call.1
$region0: #{tpu_custom_call.1}
  #allocation0 [shape = 'u32[]', space=smem, size = 0x4, offset = 0x4, fixed_abs, tag = 'smem constant byte address 0x4 - core index']
  #allocation1 [shape = 'u32[72,128]{1,0:T(1,128)}', space=vmem, size = 0x9000, scoped, tag = 'internal scratch']
  #allocation2 [shape = 'f32[8,1]{1,0:T(8,128)}', space=vmem, size = 0x1000, scoped, tag = 'scratch operand']
  #allocation3 [shape = 'f32[8,1]{1,0:T(8,128)}', space=vmem, size = 0x1000, scoped, tag = 'scratch operand']
  #allocation4 [shape = 'f32[8,1]{1,0:T(8,128)}', space=vmem, size = 0x1000, scoped, tag = 'scratch operand']
  %s0 = inlined_call_operand.hbm [shape: f32[8,256], index: 0, kind: input, shape index: {}]
  %s1 = inlined_call_operand.hbm [shape: f32[8,256], index: 1, kind: input, shape index: {}]
  %s2 = inlined_call_operand.vmem [shape: f32[8,1], index: 2, kind: output, shape index: {}]
  %s3 = sld [smem:[#allocation0]]
  $region57: #{tpu_custom_call.1} parent=0
    _
  %s5 = ssub.s32 1, %s3
  %s6 = scalar_select 0, %s5, %s3
  $region1: #{tpu_custom_call.1} parent=0
    #allocation5 [shape = 'u8[8192]{0}', space=vmem, size = 0x2000, scoped, tag = 'input window, operand 0']
    #allocation6 [shape = 's32[2]{0}', space=sflag, size = 0x8, scoped, tag = 'scoped memory for tpu_custom_call.1']
    #allocation7 [shape = 'u8[8192]{0}', space=vmem, size = 0x2000, scoped, tag = 'input window, operand 1']
    #allocation8 [shape = 's32[2]{0}', space=sflag, size = 0x8, scoped, tag = 'scoped memory for tpu_custom_call.1']
    %7 = vsyncpa [#allocation6], 0
    %s8 = scalar_lea.sflag [#allocation6], 1
    %9 = vsyncpa %s8, 0
    %10 = vsyncpa [#allocation8], 0
    %s11 = scalar_lea.sflag [#allocation8], 1
    %12 = vsyncpa %s11, 0
    loop: start=0, step=1, limit=4
    $region2: #{tpu_custom_call.1} parent=1 // loop_pre_header
      _
    $region3: #{tpu_custom_call.1} parent=1 // loop_header
      %s14 = sphi 0, %s18
      %p15 = scmp.ge.s32.totalorder %s14, 4
      %s21 = sphi 0, %s33
      %s22 = sphi 0, %s29
      %s23 = sphi 0, %s21
      %s24 = sphi 0, %s22
      %s25 = sphi 0, %s23
      %s26 = sphi 0, %s24
      %s38 = sphi 0, %s40
      %s41 = sphi 0, %s38
      %s42 = sphi 0, %s41
      %s58 = sphi 0, %s42
      %s66 = sphi 0, %s68
      %s69 = sphi 0, %s66
      %s70 = sphi 0, %s69
      %s86 = sphi 0, %s70
      %s92 = sphi 0, %s94
      %s95 = sphi 0, %s92
      %s96 = sphi 0, %s95
      %s112 = sphi 0, %s96
    $region4: #{tpu_custom_call.1} parent=1 // loop_header_branch
      %17 = sbr.rel (%p15) target = $region8
    $region5: #{tpu_custom_call.1} parent=1 // loop_body
      %s19 = ssub.s32 %s14, 1
      %s20 = ssub.s32 %s14, 2
      %s27 = sadd.s32 1, %s22
      %p28 = scmp.ge.s32.totalorder %s27, 2
      %s29 = scalar_select %p28, 0, %s27
      %s30 = sadd.s32 1, %s21
      %s31 = scalar_select %p28, %s30, %s21
      %p32 = scmp.ge.s32.totalorder %s31, 1
      %s33 = scalar_select %p32, 0, %s31
      %s34 = ssub.s32 %s21, %s33
      %s35 = ssub.s32 %s22, %s29
      %s36 = sor.u32 %s34, %s35
      %p37 = scmp.eq.s32.totalorder %s36, 0
      %s39 = sadd.s32 %s38, 1
      %s40 = scalar_select %p37, %s38, %s39
      %p43 = pneg %p37
      %p44 = scmp.eq.s32.totalorder %s14, 1
      %p45 = por %p43, %p44
      %p46 = scmp.ne.s32.totalorder %s38, %s41
      %p47 = scmp.eq.s32.totalorder %s14, 0
      %p48 = por %p46, %p47
      %p49 = scmp.ne.s32.totalorder %s38, %s41
      %p50 = scmp.eq.s32.totalorder %s19, 1
      %p51 = por %p49, %p50
      %p52 = scmp.ne.s32.totalorder %s41, %s42
      %p53 = scmp.eq.s32.totalorder %s19, 0
      %p54 = por %p52, %p53
      %p55 = scmp.ne.s32.totalorder %s41, %s42
      %p56 = scmp.eq.s32.totalorder %s20, 1
      %p57 = por %p55, %p56
      %p59 = scmp.ne.s32.totalorder %s42, %s58
      %p60 = scmp.eq.s32.totalorder %s20, 0
      %p61 = por %p59, %p60
      %s62 = ssub.s32 %s21, %s33
      %s63 = ssub.s32 %s22, %s29
      %s64 = sor.u32 %s62, %s63
      %p65 = scmp.eq.s32.totalorder %s64, 0
      %s67 = sadd.s32 %s66, 1
      %s68 = scalar_select %p65, %s66, %s67
      %p71 = pneg %p65
      %p72 = scmp.eq.s32.totalorder %s14, 1
      %p73 = por %p71, %p72
      %p74 = scmp.ne.s32.totalorder %s66, %s69
      %p75 = scmp.eq.s32.totalorder %s14, 0
      %p76 = por %p74, %p75
      %p77 = scmp.ne.s32.totalorder %s66, %s69
      %p78 = scmp.eq.s32.totalorder %s19, 1
      %p79 = por %p77, %p78
      %p80 = scmp.ne.s32.totalorder %s69, %s70
      %p81 = scmp.eq.s32.totalorder %s19, 0
      %p82 = por %p80, %p81
      %p83 = scmp.ne.s32.totalorder %s69, %s70
      %p84 = scmp.eq.s32.totalorder %s20, 1
      %p85 = por %p83, %p84
      %p87 = scmp.ne.s32.totalorder %s70, %s86
      %p88 = scmp.eq.s32.totalorder %s20, 0
      %p89 = por %p87, %p88
      %s90 = ssub.s32 %s21, %s33
      %p91 = scmp.eq.s32.totalorder %s90, 0
      %s93 = sadd.s32 %s92, 1
      %s94 = scalar_select %p91, %s92, %s93
      %p97 = pneg %p91
      %p98 = scmp.eq.s32.totalorder %s14, 1
      %p99 = por %p97, %p98
      %p100 = scmp.ne.s32.totalorder %s92, %s95
      %p101 = scmp.eq.s32.totalorder %s14, 0
      %p102 = por %p100, %p101
      %p103 = scmp.ne.s32.totalorder %s92, %s95
      %p104 = scmp.eq.s32.totalorder %s19, 1
      %p105 = por %p103, %p104
      %p106 = scmp.ne.s32.totalorder %s95, %s96
      %p107 = scmp.eq.s32.totalorder %s19, 0
      %p108 = por %p106, %p107
      %p109 = scmp.ne.s32.totalorder %s95, %s96
      %p110 = scmp.eq.s32.totalorder %s20, 1
      %p111 = por %p109, %p110
      %p113 = scmp.ne.s32.totalorder %s96, %s112
      %p114 = scmp.eq.s32.totalorder %s20, 0
      %p115 = por %p113, %p114
      %p116 = scmp.le.s32.totalorder 1, %s14
      %p117 = scmp.lt.s32.totalorder %s14, 3
      %p118 = pnand %p116, %p117
      %p119 = pneg %p118
      // Predicated region
      $region9: #{tpu_custom_call.1} parent=5 // pred_check
        _
      $region10: #{tpu_custom_call.1} parent=5 // pred_check_branch
        %121 = sbr.rel (%p118) target = $region12
      $region11: #{tpu_custom_call.1} parent=5 // pred_region
        %s122 = ssub.s32 %s14, 1
      $region12: #{tpu_custom_call.1} parent=5 // pred_fallthru
        _
      %p123 = scmp.lt.s32.totalorder %s14, 2
      // Predicated region
      $region13: #{tpu_custom_call.1} parent=5 // pred_check
        %p124 = pneg %p123
      $region14: #{tpu_custom_call.1} parent=5 // pred_check_branch
        %126 = sbr.rel (%p124) target = $region16
      $region15: #{tpu_custom_call.1} parent=5 // pred_region
        // Predicated region
        $region17: #{tpu_custom_call.1} parent=15 // pred_check
          %p127 = pneg %p48
        $region18: #{tpu_custom_call.1} parent=15 // pred_check_branch
          %129 = sbr.rel (%p127) target = $region20
        $region19: #{tpu_custom_call.1} parent=15 // pred_region
          %s130 = sand.u32 %s38, 1
          %s131 = scalar_lea.sflag [#allocation6], %s130
          %s132 = sand.u32 %s38, 1
          %s133 = smul.addr %s132, 8
          %s134 = scalar_lea.vmem [#allocation5], %s133
          %136 = vsyncadd %s131, 0
          %s137 = smul.addr %s21, 2
          %s138 = sadd.s32 %s22, %s137
          %s139 = smul.addr %s138, 8
          %s140 = scalar_lea.hbm %s0, %s139
          %s142 = sshll.u32 %s140, 4
          %s143 = int_to_ptr.hbm [resolvable:$true] %s142
          %s144 = sshll.u32 %s134, 4
          %s145 = int_to_ptr.vmem [resolvable:$true] %s144
          %147 = dma.hbm_to_vmem [thread:$0]  %s143, 128, %s145, %s131
        $region20: #{tpu_custom_call.1} parent=15 // pred_fallthru
          _
        // Predicated region
        $region21: #{tpu_custom_call.1} parent=15 // pred_check
          %p148 = pneg %p76
        $region22: #{tpu_custom_call.1} parent=15 // pred_check_branch
          %150 = sbr.rel (%p148) target = $region24
        $region23: #{tpu_custom_call.1} parent=15 // pred_region
          %s151 = sand.u32 %s66, 1
          %s152 = scalar_lea.sflag [#allocation8], %s151
          %s153 = sand.u32 %s66, 1
          %s154 = smul.addr %s153, 8
          %s155 = scalar_lea.vmem [#allocation7], %s154
          %157 = vsyncadd %s152, 0
          %s158 = smul.addr %s21, 2
          %s159 = sadd.s32 %s22, %s158
          %s160 = smul.addr %s159, 8
          %s161 = scalar_lea.hbm %s1, %s160
          %s163 = sshll.u32 %s161, 4
          %s164 = int_to_ptr.hbm [resolvable:$true] %s163
          %s165 = sshll.u32 %s155, 4
          %s166 = int_to_ptr.vmem [resolvable:$true] %s165
          %168 = dma.hbm_to_vmem [thread:$0]  %s164, 128, %s166, %s152
        $region24: #{tpu_custom_call.1} parent=15 // pred_fallthru
          _
      $region16: #{tpu_custom_call.1} parent=5 // pred_fallthru
        _
      %p169 = scmp.le.s32.totalorder 1, %s14
      %p170 = scmp.lt.s32.totalorder %s14, 3
      %p171 = pnand %p169, %p170
      %p172 = pneg %p171
      // Predicated region
      $region25: #{tpu_custom_call.1} parent=5 // pred_check
        _
      $region26: #{tpu_custom_call.1} parent=5 // pred_check_branch
        %174 = sbr.rel (%p171) target = $region28
      $region27: #{tpu_custom_call.1} parent=5 // pred_region
        %s175 = ssub.s32 %s14, 1
        %s176 = sand.u32 %s41, 1
        %s177 = scalar_lea.sflag [#allocation6], %s176
        %s178 = sand.u32 %s41, 1
        %s179 = smul.addr %s178, 8
        %s180 = scalar_lea.vmem [#allocation5], %s179
        // Predicated region
        $region29: #{tpu_custom_call.1} parent=27 // pred_check
          %p181 = pneg %p54
        $region30: #{tpu_custom_call.1} parent=27 // pred_check_branch
          %183 = sbr.rel (%p181) target = $region32
        $region31: #{tpu_custom_call.1} parent=27 // pred_region
          %185 = dma.done %s177, 128
        $region32: #{tpu_custom_call.1} parent=27 // pred_fallthru
          _
        %s186 = sand.u32 %s69, 1
        %s187 = scalar_lea.sflag [#allocation8], %s186
        %s188 = sand.u32 %s69, 1
        %s189 = smul.addr %s188, 8
        %s190 = scalar_lea.vmem [#allocation7], %s189
        // Predicated region
        $region33: #{tpu_custom_call.1} parent=27 // pred_check
          %p191 = pneg %p82
        $region34: #{tpu_custom_call.1} parent=27 // pred_check_branch
          %193 = sbr.rel (%p191) target = $region36
        $region35: #{tpu_custom_call.1} parent=27 // pred_region
          %195 = dma.done %s187, 128
        $region36: #{tpu_custom_call.1} parent=27 // pred_fallthru
          _
        %s196 = sand.u32 %s41, 1
        %s197 = scalar_lea.sflag [#allocation6], %s196
        %s198 = sand.u32 %s41, 1
        %s199 = smul.addr %s198, 8
        %s200 = scalar_lea.vmem [#allocation5], %s199
        %p201 = pneg %p54
        %p202 = pneg %p51
        %s203 = sand.u32 %s69, 1
        %s204 = scalar_lea.sflag [#allocation8], %s203
        %s205 = sand.u32 %s69, 1
        %s206 = smul.addr %s205, 8
        %s207 = scalar_lea.vmem [#allocation7], %s206
        %p208 = pneg %p82
        %p209 = pneg %p79
        %p210 = pneg %p108
        %p211 = pneg %p105
        %p212 = scmp.lt.s32.totalorder %s23, 0
        %s213 = scalar_select %p212, %s23, 0
        %s214 = smul.addr %s213, 8
        %s215 = scalar_lea.vmem %s2, %s214
        %p216 = scmp.lt.s32.totalorder %s23, 0
        %s217 = scalar_select %p216, %s23, 0
        %s218 = smul.addr %s217, 8
        %s219 = scalar_lea.vmem %s2, %s218
        %p220 = scmp.eq.s32.totalorder %s24, 0
        // Predicated region
        $region37: #{tpu_custom_call.1} parent=27 // pred_check
          %p221 = pneg %p220
        $region38: #{tpu_custom_call.1} parent=27 // pred_check_branch
          %223 = sbr.rel (%p221) target = $region40
        $region39: #{tpu_custom_call.1} parent=27 // pred_region
          %vm224 = vcmask 7168
          %225 = vst.msk [vmem:[#allocation2] sm:$0xff] %vm224, 0.0
          %226 = vst.msk [vmem:[#allocation3] sm:$0xff] %vm224, 0.0
          %227 = vst.msk [vmem:[#allocation4] sm:$0xff] %vm224, 0.0
        $region40: #{tpu_custom_call.1} parent=27 // pred_fallthru
          _
        %v228 = vld [vmem:[%s180] sm:$0xff]
        %v229 = vld [vmem:[%s190] sm:$0xff]
        %v230 = vld [vmem:[#allocation2] sm:$0xff]
        %v231 = vmul.f32 %v228, %v229
        %232 = vadd.xlane.f32.xlu0 %v231
        %v233 = vpop.xlane.xlu0 %232
        %v234 = vadd.f32 %v230, %v233
        %vm235 = vcmask 7168
        %236 = vst.msk [vmem:[#allocation2] sm:$0xff] %vm235, %v234
        %v237 = vld [vmem:[#allocation3] sm:$0xff]
        %238 = vadd.xlane.f32.xlu0 %v228
        %v239 = vpop.xlane.xlu0 %238
        %v240 = vadd.f32 %v237, %v239
        %241 = vst.msk [vmem:[#allocation3] sm:$0xff] %vm235, %v240
        %v242 = vld [vmem:[#allocation4] sm:$0xff]
        %243 = vadd.xlane.f32.xlu0 %v229
        %v244 = vpop.xlane.xlu0 %243
        %v245 = vadd.f32 %v242, %v244
        %246 = vst.msk [vmem:[#allocation4] sm:$0xff] %vm235, %v245
        %p247 = scmp.eq.s32.totalorder %s24, 1
        // Predicated region
        $region41: #{tpu_custom_call.1} parent=27 // pred_check
          %p248 = pneg %p247
        $region42: #{tpu_custom_call.1} parent=27 // pred_check_branch
          %250 = sbr.rel (%p248) target = $region44
        $region43: #{tpu_custom_call.1} parent=27 // pred_region
          %v251 = vld [vmem:[#allocation2] sm:$0xff]
          %v252 = vmul.f32 %v251, 2.0
          %v253 = vadd.f32 %v252, 1.0
          %v254 = vld [vmem:[#allocation3] sm:$0xff]
          %v255 = vld [vmem:[#allocation4] sm:$0xff]
          %v256 = vadd.f32 %v254, %v255
          %v257 = vadd.f32 %v256, 1.0
          %v258 = vadd.f32 %v257, 1e-08
          %v259 = vrcp.pop %v258
          %v260 = vmul.f32 %v258, %v259
          %v261 = vsub.f32 1.0, %v260
          %v262 = vmul.f32 %v259, %v261
          %v263 = vadd.f32 %v259, %v262
          %vm264 = vweird.f32 %v258
          %vm265 = vweird.f32 %v259
          %vm266 = vmor %vm264, %vm265
          %v267 = vsel %vm266, %v259, %v263
          %v268 = vand.u32 2147483647, %v258
          %vm269 = vcmp.eq.f32.partialorder %v268, 8.507059e+37
          %v270 = vand.u32 %v258, 2147483648
          %v271 = vor.u32 1.1754944e-38, %v270
          %v272 = vsel %vm269, %v271, %v267
          %v273 = vmul.f32 %v253, %v272
          %274 = vst.msk [vmem:[%s219] sm:$0xff] %vm235, %v273
        $region44: #{tpu_custom_call.1} parent=27 // pred_fallthru
          _
        %p275 = scmp.lt.s32.totalorder %s23, 0
        %s276 = scalar_select %p275, %s23, 0
        %s277 = smul.addr %s276, 8
        %s278 = scalar_lea.vmem %s2, %s277
        // Predicated region
        $region45: #{tpu_custom_call.1} parent=27 // pred_check
          %p279 = pneg %p105
        $region46: #{tpu_custom_call.1} parent=27 // pred_check_branch
          %281 = sbr.rel (%p279) target = $region48
        $region47: #{tpu_custom_call.1} parent=27 // pred_region
          _
        $region48: #{tpu_custom_call.1} parent=27 // pred_fallthru
          _
        // Predicated region
        $region49: #{tpu_custom_call.1} parent=27 // pred_check
          %p282 = pneg %p105
        $region50: #{tpu_custom_call.1} parent=27 // pred_check_branch
          %284 = sbr.rel (%p282) target = $region52
        $region51: #{tpu_custom_call.1} parent=27 // pred_region
          %p285 = scmp.lt.s32.totalorder %s23, 0
          %s286 = scalar_select %p285, %s23, 0
          %s287 = smul.addr %s286, 8
          %s288 = scalar_lea.vmem %s2, %s287
        $region52: #{tpu_custom_call.1} parent=27 // pred_fallthru
          _
      $region28: #{tpu_custom_call.1} parent=5 // pred_fallthru
        _
      %p289 = scmp.le.s32.totalorder 2, %s14
      // Predicated region
      $region53: #{tpu_custom_call.1} parent=5 // pred_check
        %p290 = pneg %p289
      $region54: #{tpu_custom_call.1} parent=5 // pred_check_branch
        %292 = sbr.rel (%p290) target = $region56
      $region55: #{tpu_custom_call.1} parent=5 // pred_region
        %s293 = ssub.s32 %s14, 2
      $region56: #{tpu_custom_call.1} parent=5 // pred_fallthru
        _
    $region6: #{tpu_custom_call.1} parent=1 // loop_footer
      %s18 = sadd.s32 1, %s14
    $region7: #{tpu_custom_call.1} parent=1 // loop_footer_branch
      %13 = sbr.rel target = $region3
    $region8: #{tpu_custom_call.1} parent=1 // loop_exit
      _
    %294 = vsyncpa [#allocation6], 1
    %s295 = scalar_lea.sflag [#allocation6], 1
    %296 = vsyncpa %s295, 1
    %297 = vsyncpa [#allocation8], 1
    %s298 = scalar_lea.sflag [#allocation8], 1
    %299 = vsyncpa %s298, 1

</llo_original>
